<compile_context>
chip_gen: v6e
topology: v6e:2x2x1
jax: 0.10.0
libtpu: 0.0.40
codegen_flags: <defaults>
</compile_context>

<pallas_src>
import jax
import jax.numpy as jnp
from jax import lax
from jax.experimental import pallas as pl
from jax.experimental.pallas import tpu as pltpu


def _tensorcores_per_device():
    """Best-effort TensorCores-per-device count (megacore chips have 2)."""
    try:
        kind = jax.devices()[0].device_kind.lower()
    except Exception:
        return 1
    if any(tag in kind for tag in ("v4", "v5p", "v7")):
        return 2
    return 1


def _make_kernel(total_rows):
    def kernel(w_ref, invw0_ref, pred_ref, targ_ref, out_ref, a0_ref):
        """One grid step = one (bb, HT) batch slab.

        w_ref     : (1, HT)     flattened weights (same block every step)
        invw0_ref : (1, HT)     1/weights[0, :action_dim] on lanes [0, action_dim), else 0
        pred_ref  : (bb, HT)    prediction block (native dtype)
        targ_ref  : (bb, HT)    target block (native dtype)
        out_ref   : (bb, HT)    weighted elementwise L2 loss
        a0_ref    : (1, 8, 128) per-block a0 partial sum (scalar replicated)
        """
        pred = pred_ref[...].astype(jnp.float32)
        targ = targ_ref[...].astype(jnp.float32)
        diff = pred - targ
        loss = diff * diff                                   # elementwise L2 loss
        w = w_ref[...].astype(jnp.float32)
        out_ref[...] = (loss * w).astype(out_ref.dtype)      # (1, HT) broadcasts over rows

        # a0 partial: sum of loss[:, 0, :action_dim] / weights[0, :action_dim].
        # invw0 is zero outside the a0 lanes. Rows past the true batch size
        # (ragged final block) hold undefined VMEM contents, so they are
        # masked with a select (which also stops NaN/inf garbage propagating);
        # their out_ref rows are dropped by Pallas on write-back.
        bb = loss.shape[0]
        row = lax.broadcasted_iota(jnp.int32, (bb, 1), 0)
        valid = (pl.program_id(0) * bb + row) < total_rows
        terms = jnp.where(valid, loss * invw0_ref[...], 0.0)
        a0_ref[...] = jnp.full(a0_ref.shape, jnp.sum(terms), a0_ref.dtype)

    return kernel


def weighted_loss(pred, targ, weights, action_dim, *, target_block_bytes=2 << 20):
    """Pallas implementation of WeightedLoss.forward (elementwise L2 loss).

    pred, targ : [B, H, T] (any float dtype; compute is done in f32 in-kernel)
    weights    : [H, T]
    Returns (weighted_loss [B, H, T], info dict).
    """
    B, H, T = pred.shape
    assert targ.shape == (B, H, T)
    assert weights.shape == (H, T)
    assert 0 <= action_dim <= T, "action_dim must not exceed transition_dim"

    HT = H * T
    out_dtype = jnp.promote_types(pred.dtype, weights.dtype)
    in_item = jnp.dtype(pred.dtype).itemsize
    out_item = jnp.dtype(out_dtype).itemsize

    # Flattened 2-D views in the native dtype (free reshapes; no pads/casts).
    pred2 = pred.reshape(B, HT)
    targ2 = targ.reshape(B, HT)
    w2 = weights.reshape(1, HT)

    # Masked reciprocal of weights[0, :action_dim]. In the flattened layout,
    # horizon row 0 occupies lanes [0, T), so the a0 lanes are exactly
    # lanes [0, action_dim). Guarded divide avoids inf on unused lanes.
    lane = jnp.arange(HT)
    a0_mask = lane < action_dim
    w_row = weights.reshape(HT).astype(jnp.float32)
    invw0 = (jnp.where(a0_mask, 1.0, 0.0)
             / jnp.where(a0_mask, w_row, 1.0)).astype(jnp.float32).reshape(1, HT)

    # --- batch blocking ---------------------------------------------------
    # ~target_block_bytes of input per grid step; rows a multiple of 8 (or the
    # whole batch); capped so the double-buffered working set fits VMEM; on
    # multi-TC chips keep >= 2 grid steps per TensorCore when the batch allows.
    row_in_bytes = HT * in_item
    row_bytes_total = HT * (2 * in_item + out_item)
    bb = max(1, int(target_block_bytes) // max(1, row_in_bytes))
    bb = min(bb, max(1, (20 << 20) // max(1, row_bytes_total)))
    n_tc = _tensorcores_per_device()
    if n_tc > 1:
        per_step = B // (2 * n_tc)
        if per_step >= 8:
            bb = min(bb, per_step)
    if bb >= B:
        bb = B
    else:
        bb = max(8, (bb // 8) * 8)
        if bb >= B:
            bb = B
    nb = pl.cdiv(B, bb)          # ragged final block handled by Pallas (no pad copy)

    out_shapes = (
        jax.ShapeDtypeStruct((B, HT), out_dtype),          # weighted loss (exact shape)
        jax.ShapeDtypeStruct((nb, 8, 128), jnp.float32),   # a0 partial per block
    )

    grid_spec = pltpu.PrefetchScalarGridSpec(
        num_scalar_prefetch=0,
        grid=(nb,),
        in_specs=[
            pl.BlockSpec((1, HT), lambda b: (0, 0)),        # weights (resident)
            pl.BlockSpec((1, HT), lambda b: (0, 0)),        # masked 1/w0 (resident)
            pl.BlockSpec((bb, HT), lambda b: (b, 0)),       # pred
            pl.BlockSpec((bb, HT), lambda b: (b, 0)),       # targ
        ],
        out_specs=[
            pl.BlockSpec((bb, HT), lambda b: (b, 0)),       # weighted loss
            pl.BlockSpec((1, 8, 128), lambda b: (b, 0, 0)),  # a0 partials
        ],
    )

    # Double-buffered working set + small resident arrays, with headroom.
    working = 2 * bb * row_bytes_total + 2 * 2 * HT * 4 + 2 * 8 * 128 * 4
    vmem_limit = int(min(48 << 20, max(32 << 20, working + (4 << 20))))

    cost = pl.CostEstimate(
        flops=5 * B * HT,
        transcendentals=0,
        bytes_accessed=(2 * B * HT * in_item + B * HT * out_item
                        + 2 * HT * 4 + nb * 8 * 128 * 4),
    )

    out2, a0_partials = pl.pallas_call(
        _make_kernel(B),
        out_shape=out_shapes,
        grid_spec=grid_spec,
        compiler_params=pltpu.CompilerParams(
            dimension_semantics=("parallel",),
            vmem_limit_bytes=vmem_limit),
        cost_estimate=cost,
    )(w2, invw0, pred2, targ2)

    weighted = out2.reshape(B, H, T)     # free view: (B, HT) -> (B, H, T)
    if action_dim > 0:
        a0_loss = jnp.sum(a0_partials[:, 0, 0]) / (B * action_dim)
        info = {"a0_loss": a0_loss}
    else:
        info = {}
    return weighted, info


def _reference(pred, targ, weights, action_dim):
    # Kernel computes the loss in f32 regardless of input dtype, so the
    # reference upcasts too.
    pred = pred.astype(jnp.float32)
    targ = targ.astype(jnp.float32)
    weights = weights.astype(jnp.float32)
    loss = (pred - targ) ** 2
    weighted = loss * weights[None, :, :]
    if action_dim > 0:
        a0 = jnp.mean(loss[:, 0, :action_dim] / weights[0, :action_dim])
        return weighted, {"a0_loss": a0}
    return weighted, {}


def _make_inputs(key, B, H, T):
    k1, k2 = jax.random.split(key)
    pred = jax.random.normal(k1, (B, H, T), dtype=jnp.float32)
    targ = jax.random.normal(k2, (B, H, T), dtype=jnp.float32)
    discounts = 0.99 ** jnp.arange(H, dtype=jnp.float32)          # [H]
    dim_w = jnp.linspace(0.5, 1.5, T, dtype=jnp.float32)          # [T]
    weights = discounts[:, None] * dim_w[None, :]                 # [H, T]
    return pred, targ, weights


def _check(pred, targ, weights, action_dim, **kw):
    weighted, info = weighted_loss(pred, targ, weights, action_dim, **kw)
    jax.block_until_ready(weighted)
    if action_dim > 0:
        jax.block_until_ready(info["a0_loss"])
    ref_w, ref_info = _reference(pred, targ, weights, action_dim)
    assert jnp.allclose(weighted, ref_w, atol=1e-5, rtol=1e-5)
    if action_dim > 0:
        assert jnp.allclose(info["a0_loss"], ref_info["a0_loss"],
                            atol=1e-5, rtol=1e-5)


if __name__ == "__main__":
    key = jax.random.PRNGKey(0)
    k1, k2, k3 = jax.random.split(key, 3)

    # Test 1: small shapes, HT = 160 (not a multiple of 128) exercises the
    # unpadded lane-dense path with block last dim == full dim; single block.
    B, H, T, action_dim = 4, 8, 20, 6
    pred, targ, weights = _make_inputs(k1, B, H, T)
    _check(pred, targ, weights, action_dim)

    # Test 2: multi-block grid with a ragged final block (B=26, bb=8, nb=4,
    # last block has 2 valid rows) — exercises the in-kernel a0 row mask and
    # Pallas' dropped OOB output rows, with no wrapper-side batch pad.
    B2, H2, T2, action_dim2 = 26, 8, 20, 6
    pred2, targ2, weights2 = _make_inputs(k2, B2, H2, T2)
    _check(pred2, targ2, weights2, action_dim2, target_block_bytes=4096)

    # Test 3: native bf16 inputs DMA'd without a wrapper-side cast; loss is
    # computed in f32 inside the kernel and written as f32.
    B3, H3, T3, action_dim3 = 16, 4, 32, 5
    pred3, targ3, weights3 = _make_inputs(k3, B3, H3, T3)
    _check(pred3.astype(jnp.bfloat16), targ3.astype(jnp.bfloat16),
           weights3, action_dim3)

    print("KERNEL_OK")
</pallas_src>

<mosaic_0001>
module attributes {stable_mosaic.version = 11 : i64} {
  func.func @kernel(%arg0: i32, %arg1: memref<1x160xf32, #tpu.memory_space<vmem>>, %arg2: memref<1x160xf32, #tpu.memory_space<vmem>>, %arg3: memref<4x160xf32, #tpu.memory_space<vmem>>, %arg4: memref<4x160xf32, #tpu.memory_space<vmem>>, %arg5: memref<4x160xf32, #tpu.memory_space<vmem>>, %arg6: memref<1x8x128xf32, #tpu.memory_space<vmem>>) attributes {dimension_semantics = [#tpu.dimension_semantics<parallel>], iteration_bounds = array<i64: 1>, scalar_prefetch = 0 : i64, scratch_operands = 0 : i64, tpu.core_type = #tpu.core_type<tc>, window_params = [{pipeline_mode = #tpu.pipeline_mode<synchronous>, transform_indices = @transform_0, window_bounds = array<i64: 1, 160>}, {pipeline_mode = #tpu.pipeline_mode<synchronous>, transform_indices = @transform_1, window_bounds = array<i64: 1, 160>}, {transform_indices = @transform_2, window_bounds = array<i64: 4, 160>}, {transform_indices = @transform_3, window_bounds = array<i64: 4, 160>}, {transform_indices = @transform_4, window_bounds = array<i64: 4, 160>}, {transform_indices = @transform_5, window_bounds = array<i64: 1, 8, 128>}]} {
    %c0 = arith.constant 0 : index
    %c0_0 = arith.constant 0 : index
    %0 = vector.load %arg3[%c0, %c0_0] : memref<4x160xf32, #tpu.memory_space<vmem>>, vector<4x160xf32>
    %c0_1 = arith.constant 0 : index
    %c0_2 = arith.constant 0 : index
    %1 = vector.load %arg4[%c0_1, %c0_2] : memref<4x160xf32, #tpu.memory_space<vmem>>, vector<4x160xf32>
    %2 = arith.subf %0, %1 : vector<4x160xf32>
    %3 = arith.mulf %2, %2 : vector<4x160xf32>
    %c0_3 = arith.constant 0 : index
    %c0_4 = arith.constant 0 : index
    %4 = vector.load %arg1[%c0_3, %c0_4] : memref<1x160xf32, #tpu.memory_space<vmem>>, vector<1x160xf32>
    %5 = vector.broadcast %4 : vector<1x160xf32> to vector<4x160xf32>
    %6 = arith.mulf %3, %5 : vector<4x160xf32>
    %c0_5 = arith.constant 0 : index
    %c0_6 = arith.constant 0 : index
    %7 = vector.load %arg5[%c0_5, %c0_6] : memref<4x160xf32, #tpu.memory_space<vmem>>, vector<4x160xf32>
    tpu.vector_store %arg5[%c0_5, %c0_6], %6 {strides = array<i32>} : memref<4x160xf32, #tpu.memory_space<vmem>>, vector<4x160xf32>,
    %8 = tpu.iota {dimensions = array<i32: 0>} : vector<4x1xi32>
    %c4_i32 = arith.constant 4 : i32
    %9 = arith.muli %arg0, %c4_i32 : i32
    %10 = vector.broadcast %9 : i32 to vector<4x1xi32>
    %11 = arith.addi %10, %8 : vector<4x1xi32>
    %c4_i32_7 = arith.constant 4 : i32
    %12 = vector.broadcast %c4_i32_7 : i32 to vector<4x1xi32>
    %13 = arith.cmpi slt, %11, %12 : vector<4x1xi32>
    %c0_8 = arith.constant 0 : index
    %c0_9 = arith.constant 0 : index
    %14 = vector.load %arg2[%c0_8, %c0_9] : memref<1x160xf32, #tpu.memory_space<vmem>>, vector<1x160xf32>
    %15 = vector.broadcast %14 : vector<1x160xf32> to vector<4x160xf32>
    %16 = arith.mulf %3, %15 : vector<4x160xf32>
    %cst = arith.constant 0.000000e+00 : f32
    %17 = vector.shape_cast %13 : vector<4x1xi1> to vector<4x1xi1>
    %18 = vector.broadcast %17 : vector<4x1xi1> to vector<4x160xi1>
    %19 = vector.broadcast %cst : f32 to vector<4x160xf32>
    %20 = arith.select %18, %16, %19 : vector<4x160xi1>, vector<4x160xf32>
    %21 = vector.shape_cast %20 : vector<4x160xf32> to vector<1x4x160xf32>
    %cst_10 = arith.constant dense<0.000000e+00> : vector<1xf32>
    %22 = vector.multi_reduction <add>, %21, %cst_10 [1, 2] : vector<1x4x160xf32> to vector<1xf32>
    %23 = vector.shape_cast %22 : vector<1xf32> to vector<1x1x1xf32>
    %24 = vector.extract %23[0, 0, 0] : f32 from vector<1x1x1xf32>
    %25 = vector.broadcast %24 : f32 to vector<1x8x128xf32>
    %c0_11 = arith.constant 0 : index
    %c0_12 = arith.constant 0 : index
    %c0_13 = arith.constant 0 : index
    %26 = vector.load %arg6[%c0_11, %c0_12, %c0_13] : memref<1x8x128xf32, #tpu.memory_space<vmem>>, vector<1x8x128xf32>
    tpu.vector_store %arg6[%c0_11, %c0_12, %c0_13], %25 {strides = array<i32>} : memref<1x8x128xf32, #tpu.memory_space<vmem>>, vector<1x8x128xf32>,
    return
  }
  func.func @transform_0(%arg0: i32) -> (i32, i32) {
    %c0_i32 = arith.constant 0 : i32
    %c0_i32_0 = arith.constant 0 : i32
    %c0_i32_1 = arith.constant 0 : i32
    return %c0_i32, %c0_i32_0 : i32, i32
  }
  func.func @transform_1(%arg0: i32) -> (i32, i32) {
    %c0_i32 = arith.constant 0 : i32
    %c0_i32_0 = arith.constant 0 : i32
    %c0_i32_1 = arith.constant 0 : i32
    return %c0_i32, %c0_i32_0 : i32, i32
  }
  func.func @transform_2(%arg0: i32) -> (i32, i32) {
    %c0_i32 = arith.constant 0 : i32
    %c0_i32_0 = arith.constant 0 : i32
    return %arg0, %c0_i32 : i32, i32
  }
  func.func @transform_3(%arg0: i32) -> (i32, i32) {
    %c0_i32 = arith.constant 0 : i32
    %c0_i32_0 = arith.constant 0 : i32
    return %arg0, %c0_i32 : i32, i32
  }
  func.func @transform_4(%arg0: i32) -> (i32, i32) {
    %c0_i32 = arith.constant 0 : i32
    %c0_i32_0 = arith.constant 0 : i32
    return %arg0, %c0_i32 : i32, i32
  }
  func.func @transform_5(%arg0: i32) -> (i32, i32, i32) {
    %c0_i32 = arith.constant 0 : i32
    %c0_i32_0 = arith.constant 0 : i32
    %c0_i32_1 = arith.constant 0 : i32
    return %arg0, %c0_i32, %c0_i32_0 : i32, i32, i32
  }
}

</mosaic_0001>

<llo_original>
// kernel: tpu_custom_call.1
$region0: #{tpu_custom_call.1}
  #allocation0 [shape = 'u32[]', space=smem, size = 0x4, offset = 0x4, fixed_abs, tag = 'smem constant byte address 0x4 - core index']
  #allocation1 [shape = 'u32[144,128]{1,0:T(1,128)}', space=vmem, size = 0x12000, scoped, tag = 'internal scratch']
  %s0 = inlined_call_operand.hbm [shape: f32[1,160], index: 0, kind: input, shape index: {}]
  %s1 = inlined_call_operand.hbm [shape: f32[1,160], index: 1, kind: input, shape index: {}]
  %s2 = inlined_call_operand.hbm [shape: f32[4,160], index: 2, kind: input, shape index: {}]
  %s3 = inlined_call_operand.hbm [shape: f32[4,160], index: 3, kind: input, shape index: {}]
  %s4 = inlined_call_operand.hbm [shape: f32[4,160], index: 4, kind: output, shape index: {0}]
  %s5 = inlined_call_operand.hbm [shape: f32[1,8,128], index: 5, kind: output, shape index: {1}]
  %6 = xla_tuple %s4, %s5
  %s7 = sld [smem:[#allocation0]]
  $region50: #{tpu_custom_call.1} parent=0
    _
  %s9 = ssub.s32 1, %s7
  %s10 = scalar_select 0, %s9, %s7
  $region1: #{tpu_custom_call.1} parent=0
    #allocation2 [shape = 'u8[1024]{0}', space=vmem, size = 0x400, scoped, tag = 'input window, operand 0, single buffered']
    #allocation3 [shape = 's32[1]{0}', space=sflag, size = 0x4, scoped, tag = 'scoped memory for tpu_custom_call.1']
    #allocation4 [shape = 's32[1]{0}', space=sflag, size = 0x4, scoped, tag = 'scoped memory for tpu_custom_call.1']
    #allocation5 [shape = 'u8[1024]{0}', space=vmem, size = 0x400, scoped, tag = 'input window, operand 1, single buffered']
    #allocation6 [shape = 's32[1]{0}', space=sflag, size = 0x4, scoped, tag = 'scoped memory for tpu_custom_call.1']
    #allocation7 [shape = 'u8[4096]{0}', space=vmem, size = 0x1000, scoped, tag = 'input window, operand 2, single buffered']
    #allocation8 [shape = 'u8[4096]{0}', space=vmem, size = 0x1000, scoped, tag = 'input window, operand 3, single buffered']
    #allocation9 [shape = 's32[1]{0}', space=sflag, size = 0x4, scoped, tag = 'scoped memory for tpu_custom_call.1']
    #allocation10 [shape = 'u8[4096]{0}', space=vmem, size = 0x1000, scoped, tag = 'output window, operand 0, single buffered']
    #allocation11 [shape = 'u8[4096]{0}', space=vmem, size = 0x1000, scoped, tag = 'output window, operand 1, single buffered']
    #allocation12 [shape = 's32[1]{0}', space=sflag, size = 0x4, scoped, tag = 'scoped memory for tpu_custom_call.1']
    %11 = vsyncpa [#allocation3], 0
    %12 = vsyncpa [#allocation6], 0
    %13 = vsyncpa [#allocation9], 0
    %14 = vsyncpa [#allocation4], 0
    %15 = vsyncpa [#allocation12], 0
    // Predicated region
    $region2: #{tpu_custom_call.1} parent=1 // pred_check
      _
    $region3: #{tpu_custom_call.1} parent=1 // pred_check_branch
      %17 = sbr.rel (0) target = $region5
    $region4: #{tpu_custom_call.1} parent=1 // pred_region
      %s19 = ssub.s32 32, 32
      %20 = vsyncadd [#allocation3], %s19
      %s22 = sshll.u32 [#allocation2], 4
      %s23 = int_to_ptr.vmem [resolvable:$true] %s22
      %25 = dma.hbm_to_vmem [thread:$0]  %s0, 32, %s23, [#allocation3]
    $region5: #{tpu_custom_call.1} parent=1 // pred_fallthru
      _
    // Predicated region
    $region6: #{tpu_custom_call.1} parent=1 // pred_check
      _
    $region7: #{tpu_custom_call.1} parent=1 // pred_check_branch
      %27 = sbr.rel (0) target = $region9
    $region8: #{tpu_custom_call.1} parent=1 // pred_region
      %s29 = ssub.s32 32, 32
      %30 = vsyncadd [#allocation6], %s29
      %s32 = sshll.u32 [#allocation5], 4
      %s33 = int_to_ptr.vmem [resolvable:$true] %s32
      %35 = dma.hbm_to_vmem [thread:$0]  %s1, 32, %s33, [#allocation6]
    $region9: #{tpu_custom_call.1} parent=1 // pred_fallthru
      _
    // Predicated region
    $region10: #{tpu_custom_call.1} parent=1 // pred_check
      _
    $region11: #{tpu_custom_call.1} parent=1 // pred_check_branch
      %37 = sbr.rel (0) target = $region13
    $region12: #{tpu_custom_call.1} parent=1 // pred_region
      %s39 = ssub.s32 128, 128
      %40 = vsyncadd [#allocation6], %s39
      %s42 = sshll.u32 [#allocation7], 4
      %s43 = int_to_ptr.vmem [resolvable:$true] %s42
      %45 = dma.hbm_to_vmem [thread:$0]  %s2, 128, %s43, [#allocation6]
    $region13: #{tpu_custom_call.1} parent=1 // pred_fallthru
      _
    // Predicated region
    $region14: #{tpu_custom_call.1} parent=1 // pred_check
      _
    $region15: #{tpu_custom_call.1} parent=1 // pred_check_branch
      %47 = sbr.rel (0) target = $region17
    $region16: #{tpu_custom_call.1} parent=1 // pred_region
      %s49 = ssub.s32 128, 128
      %50 = vsyncadd [#allocation9], %s49
      %s52 = sshll.u32 [#allocation8], 4
      %s53 = int_to_ptr.vmem [resolvable:$true] %s52
      %55 = dma.hbm_to_vmem [thread:$0]  %s3, 128, %s53, [#allocation9]
    $region17: #{tpu_custom_call.1} parent=1 // pred_fallthru
      _
    // Predicated region
    $region18: #{tpu_custom_call.1} parent=1 // pred_check
      _
    $region19: #{tpu_custom_call.1} parent=1 // pred_check_branch
      %57 = sbr.rel (0) target = $region21
    $region20: #{tpu_custom_call.1} parent=1 // pred_region
      %58 = dma.done [#allocation3], 32
    $region21: #{tpu_custom_call.1} parent=1 // pred_fallthru
      _
    // Predicated region
    $region22: #{tpu_custom_call.1} parent=1 // pred_check
      _
    $region23: #{tpu_custom_call.1} parent=1 // pred_check_branch
      %60 = sbr.rel (0) target = $region25
    $region24: #{tpu_custom_call.1} parent=1 // pred_region
      %61 = dma.done [#allocation6], 32
    $region25: #{tpu_custom_call.1} parent=1 // pred_fallthru
      _
    // Predicated region
    $region26: #{tpu_custom_call.1} parent=1 // pred_check
      _
    $region27: #{tpu_custom_call.1} parent=1 // pred_check_branch
      %63 = sbr.rel (0) target = $region29
    $region28: #{tpu_custom_call.1} parent=1 // pred_region
      %64 = dma.done [#allocation6], 128
    $region29: #{tpu_custom_call.1} parent=1 // pred_fallthru
      _
    // Predicated region
    $region30: #{tpu_custom_call.1} parent=1 // pred_check
      _
    $region31: #{tpu_custom_call.1} parent=1 // pred_check_branch
      %66 = sbr.rel (0) target = $region33
    $region32: #{tpu_custom_call.1} parent=1 // pred_region
      %67 = dma.done [#allocation9], 128
    $region33: #{tpu_custom_call.1} parent=1 // pred_fallthru
      _
    %v68 = vld [vmem:[#allocation7] sm:$0xff]
    %v69 = vld [vmem:[#allocation8] sm:$0xff]
    %v70 = vsub.f32 %v68, %v69
    %v71 = vmul.f32 %v70, %v70
    %v72 = vld [vmem:[#allocation2] sm:$0x3]
    %v74 = vlaneseq
    %v75 = vshrl.u32 %v74, 7
    %v76 = vsub.s32 0, %v75
    %v77 = vrot.slane %v72, %v76
    %v78 = vlaneseq
    %v79 = vshrl.u32 %v78, 7
    %v80 = vsub.s32 1, %v79
    %v81 = vrot.slane %v72, %v80
    %v82 = vcombine.low %v77, %v81
    %v84 = vmul.f32 %v71, %v82
    %vm85 = vcmask 1043456
    %vm86 = vcmask 261124
    %vm87 = vmor %vm86, %vm85
    %88 = vst.msk [vmem:[#allocation10] sm:$0xff] %vm87, %v84
    %v89 = vlaneseq
    %v90 = vshrl.u32 %v89, 7
    %s91 = smul.u32 0, 4
    %v92 = vstv %s91
    %v93 = vadd.s32 %v92, %v90
    %vm94 = vcmp.lt.s32.totalorder %v93, 4
    %v95 = vld [vmem:[#allocation5] sm:$0x3]
    %v97 = vlaneseq
    %v98 = vshrl.u32 %v97, 7
    %v99 = vsub.s32 0, %v98
    %v100 = vrot.slane %v95, %v99
    %v101 = vlaneseq
    %v102 = vshrl.u32 %v101, 7
    %v103 = vsub.s32 1, %v102
    %v104 = vrot.slane %v95, %v103
    %v105 = vcombine.low %v100, %v104
    %v107 = vmul.f32 %v71, %v105
    %v108 = vsel %vm94, 1, 0
    %vm109 = vcmp.eq.s32.totalorder %v108, 1
    %v111 = vcombine.high %v107, %v107
    %v113 = vsel %vm109, %v107, 0.0
    %v114 = vsel %vm109, %v111, 0.0
    %v115 = vsel %vm85, %v113, 0.0
    %vm116 = vcmask 257024
    %v117 = vsel %vm116, %v114, 0.0
    %v118 = vadd.f32 %v115, %v117
    %119 = vadd.xlane.f32.xlu0 %v118
    %v120 = vpop.xlane.xlu0 %119
    %v121 = vrot.slane %v120, 4
    %v122 = vadd.f32 %v120, %v121
    %v123 = vrot.slane %v122, 2
    %v124 = vadd.f32 %v122, %v123
    %v125 = vrot.slane %v124, 1
    %v126 = vadd.f32 %v124, %v125
    %s127 = vtos %v126
    %v128 = vstv %s127
    %129 = vst [vmem:[#allocation11] sm:$0xff] %v128
    // Predicated region
    $region34: #{tpu_custom_call.1} parent=1 // pred_check
      _
    $region35: #{tpu_custom_call.1} parent=1 // pred_check_branch
      %131 = sbr.rel (0) target = $region37
    $region36: #{tpu_custom_call.1} parent=1 // pred_region
      %s133 = ssub.s32 128, 128
      %134 = vsyncadd [#allocation4], %s133
      %s136 = sshll.u32 [#allocation10], 4
      %s137 = int_to_ptr.vmem [resolvable:$true] %s136
      %139 = dma.vmem_to_hbm [thread:$0]  %s137, 128, %s4, [#allocation4]
    $region37: #{tpu_custom_call.1} parent=1 // pred_fallthru
      _
    // Predicated region
    $region38: #{tpu_custom_call.1} parent=1 // pred_check
      _
    $region39: #{tpu_custom_call.1} parent=1 // pred_check_branch
      %141 = sbr.rel (0) target = $region41
    $region40: #{tpu_custom_call.1} parent=1 // pred_region
      %s143 = ssub.s32 128, 128
      %144 = vsyncadd [#allocation12], %s143
      %s146 = sshll.u32 [#allocation11], 4
      %s147 = int_to_ptr.vmem [resolvable:$true] %s146
      %149 = dma.vmem_to_hbm [thread:$0]  %s147, 128, %s5, [#allocation12]
    $region41: #{tpu_custom_call.1} parent=1 // pred_fallthru
      _
    // Predicated region
    $region42: #{tpu_custom_call.1} parent=1 // pred_check
      _
    $region43: #{tpu_custom_call.1} parent=1 // pred_check_branch
      %151 = sbr.rel (0) target = $region45
    $region44: #{tpu_custom_call.1} parent=1 // pred_region
      %152 = dma.done [#allocation4], 128
    $region45: #{tpu_custom_call.1} parent=1 // pred_fallthru
      _
    // Predicated region
    $region46: #{tpu_custom_call.1} parent=1 // pred_check
      _
    $region47: #{tpu_custom_call.1} parent=1 // pred_check_branch
      %154 = sbr.rel (0) target = $region49
    $region48: #{tpu_custom_call.1} parent=1 // pred_region
      %155 = dma.done [#allocation12], 128
    $region49: #{tpu_custom_call.1} parent=1 // pred_fallthru
      _
    %156 = vsyncpa [#allocation3], 1
    %157 = vsyncpa [#allocation6], 1
    %158 = vsyncpa [#allocation9], 1
    %159 = vsyncpa [#allocation4], 1
    %160 = vsyncpa [#allocation12], 1

</llo_original>
